<compile_context>
chip_gen: v7x
topology: tpu7x:2x2x1
jax: 0.10.0
libtpu: 0.0.40
codegen_flags: <defaults>
</compile_context>

<pallas_src>
import functools

import jax
import jax.numpy as jnp
from jax.experimental import pallas as pl
from jax.experimental.pallas import tpu as pltpu


def _mlp_kernel(x_ref, wbig_ref, wpost_ref, bf1_ref, bo_ref, o_ref):
    """Fused ResMLP(depth=1, num_patch=1) forward on one slab tile.

    Shapes (F = 128 // C slab factor, one slab row packs F original rows):
        x_ref    : (TMs, F*C)          f32   input slab rows
        wbig_ref : (F*C, F*(H+C))      bf16  block-diag [We@W1 | We@Wh]
        wpost_ref: (F*H, F*C)          bf16  block-diag W2@Wh
        bf1_ref  : (1, F*H)            f32   tiled FF bias
        bo_ref   : (1, F*C)            f32   tiled output bias
        o_ref    : (TMs, F*C)                output slab rows
    Math per original row:
        z1  = x @ (We'@W1) + b1          (first F*H lanes of z)
        res = x @ (We'@Wh')              (last  F*C lanes of z)
        out = gelu(z1) @ (W2'@Wh') + res + b_out
    """
    fh = bf1_ref.shape[-1]                       # F*H (static)

    x = x_ref[...].astype(jnp.bfloat16)          # f32 DMA, VPU cast (free under MXU)
    z = jnp.dot(x, wbig_ref[...], preferred_element_type=jnp.float32)

    f = jax.nn.gelu(z[:, :fh] + bf1_ref[...], approximate=True)   # tanh -> EUP

    out = (jnp.dot(f.astype(jnp.bfloat16), wpost_ref[...],
                   preferred_element_type=jnp.float32)
           + z[:, fh:] + bo_ref[...])

    # TODO(synk): nn.Dropout(drop) with drop > 0 (training mode) not implemented;
    # the module default drop=0.0 makes it the identity here.
    o_ref[...] = out.astype(o_ref.dtype)


def _round_up(n, m):
    return (n + m - 1) // m * m


def _default_vmem():
    """(vmem_budget, vmem_limit_bytes) picked per TPU generation."""
    try:
        kind = jax.devices()[0].device_kind.lower()
    except Exception:  # pragma: no cover - defensive
        kind = ""
    if "v5" in kind or "v6" in kind:
        # 128 MiB physical VMEM: afford bigger row tiles.
        return 48 * 1024 * 1024, 64 * 1024 * 1024
    # v7x (64 MiB physical / 32 MiB scoped default) and unknown chips: conservative.
    return 20 * 1024 * 1024, 32 * 1024 * 1024


def _pick_row_tile(n_rows, C, H, F, out_bytes, tm_request, vmem_budget,
                   min_grid_steps=4):
    """Row tile (in original rows): big for per-step amortization, capped so the
    grid has >= min_grid_steps steps (v7x megacore / DMA overlap) and so the
    lane/sublane-padded VMEM footprint fits the budget."""
    unit = 8 * F                                   # slab sublanes must stay %8
    FC, FH = F * C, F * H
    Wg = FH + FC
    lane = lambda d: _round_up(d, 128)             # physical lane padding

    def est(tm):
        tms = tm // F
        bf16, f32 = 2, 4
        io = 2 * tms * lane(FC) * f32 + 2 * tms * lane(FC) * out_bytes  # dbl-buf x/out
        w = 2 * (FC * lane(Wg) + FH * lane(FC)) * bf16                  # dbl-buf weights
        b = 2 * 8 * (lane(FH) + lane(FC)) * f32                         # padded biases
        live = tms * (lane(Wg) + lane(FH) + 2 * lane(FC)) * f32         # z / gelu / out
        return io + w + b + live

    tm_hi = max(unit, _round_up(min(tm_request, max(n_rows, 1)), unit))
    steps = max(min_grid_steps, -(-n_rows // tm_hi))
    tm = max(unit, _round_up(-(-n_rows // steps), unit))
    while tm > unit and est(tm) > vmem_budget:
        tm = max(unit, _round_up(tm // 2, unit))
    return tm


def fold_params(p, lane_width=128):
    """Constant-fold the whole depth-1 ResMLP into 2 matmuls + 2 bias rows, then
    build block-diagonal "slab" weights so that, for C < 128, F = 128 // C
    original rows are processed per lane-dense slab row.

    Per row (num_patch == 1) the module computes
        h  = x @ We + be
        a1 = h*a1 + b1 ; tok = a1*wt + bt ; r1 = a1 + g1*tok
        a2 = r1*a2_ + b2
        f1 = gelu(a2 @ W1 + bf1) ; f2 = f1 @ W2 + bf2 ; r2 = a2 + g2*f2
        a3 = r2*a3_ + b3 ; out = a3 @ Wh + bh
    which collapses (everything after the GELU being linear) to
        out = x @ (We'@Wh') + gelu(x @ (We'@W1) + b1') @ (W2'@Wh') + b_out'
    """
    f32, bf16 = jnp.float32, jnp.bfloat16
    C = p["we"].shape[0]
    H = p["w1"].shape[1]

    wt = p["wt"][0].astype(f32)
    bt = p["bt"][0].astype(f32)

    # --- stage 1: fold affines / layer-scales / token-mix into 4 mats + biases
    k = 1.0 + p["g1"] * wt                                   # (1, C)
    s1 = p["alpha1"] * k * p["alpha2"]                       # (1, C)
    we_f = p["we"] * s1                                      # column scale
    b_a2 = p["be"] * s1 + (p["beta1"] * k + p["g1"] * bt) * p["alpha2"] + p["beta2"]

    w2_f = p["w2"] * p["g2"]                                 # column scale
    b_r2 = p["g2"] * p["bf2"]

    wh_f = p["alpha3"].T * p["wh"]                           # row scale
    b_head = p["beta3"] @ p["wh"] + p["bh"]

    # --- stage 2: 4 matmuls -> 2
    wbig1 = we_f @ p["w1"]                                   # (C, H)
    wbig2 = we_f @ wh_f                                      # (C, C)
    w_post = w2_f @ wh_f                                     # (H, C)
    bf1_tot = b_a2 @ p["w1"] + p["bf1"]                      # (1, H)
    b_out = (b_a2 + b_r2) @ wh_f + b_head                    # (1, C)

    # --- stage 3: block-diagonal slab weights (lane-dense I/O when C < 128)
    if C < lane_width and lane_width % C == 0:
        F = lane_width // C
    else:
        F = 1
    eye = jnp.eye(F, dtype=f32)
    w_big = jnp.concatenate(
        [jnp.kron(eye, wbig1), jnp.kron(eye, wbig2)], axis=1)  # (F*C, F*(H+C))
    w_post_s = jnp.kron(eye, w_post)                           # (F*H, F*C)
    bf1_s = jnp.tile(bf1_tot, (1, F))                          # (1, F*H)
    b_out_s = jnp.tile(b_out, (1, F))                          # (1, F*C)

    return {
        "w_big": w_big.astype(bf16),
        "w_post": w_post_s.astype(bf16),
        "bf1": bf1_s.astype(f32),
        "b_out": b_out_s.astype(f32),
    }


def mlp_forward(x, fused, *, tm=2048, vmem_budget=None, vmem_limit=None):
    """Runs the Mlp forward pass.  x: (..., C); `fused` from fold_params()."""
    orig_shape = x.shape
    C = orig_shape[-1]

    # Slab geometry derived from the (static) fused weight shapes.
    FC = fused["b_out"].shape[1]
    F = FC // C
    FH = fused["bf1"].shape[1]
    H = FH // F
    Wg = FH + FC

    xf = x.reshape(-1, C)
    N = xf.shape[0]
    out_dtype = x.dtype
    out_bytes = jnp.dtype(out_dtype).itemsize

    if vmem_budget is None or vmem_limit is None:
        b, l = _default_vmem()
        vmem_budget = vmem_budget or b
        vmem_limit = vmem_limit or l

    tm_eff = _pick_row_tile(N, C, H, F, out_bytes, tm, vmem_budget)
    n_pad = _round_up(N, tm_eff)
    if n_pad != N:
        xf = jnp.pad(xf, ((0, n_pad - N), (0, 0)))

    # Contiguous row-major reshape: free.  Each slab row packs F original rows
    # side-by-side along lanes, so x/out DMAs and stores are 128-lane dense.
    xs = xf.reshape(n_pad // F, FC)
    tms = tm_eff // F
    grid = (n_pad // tm_eff,)

    full = lambda shp: pl.BlockSpec(shp, lambda i: (0, 0))
    out = pl.pallas_call(
        _mlp_kernel,
        out_shape=jax.ShapeDtypeStruct((n_pad // F, FC), out_dtype),
        grid=grid,
        in_specs=[
            pl.BlockSpec((tms, FC), lambda i: (i, 0)),   # x slab tile (f32)
            full((FC, Wg)),                              # block-diag [We@W1 | We@Wh]
            full((FH, FC)),                              # block-diag W2@Wh
            full((1, FH)),                               # tiled FF bias
            full((1, FC)),                               # tiled output bias
        ],
        out_specs=pl.BlockSpec((tms, FC), lambda i: (i, 0)),
        compiler_params=pltpu.CompilerParams(
            dimension_semantics=("parallel",),           # shards across v7x's 2 TCs
            vmem_limit_bytes=vmem_limit,
        ),
    )(xs, fused["w_big"], fused["w_post"], fused["bf1"], fused["b_out"])

    out = out.reshape(n_pad, C)
    if n_pad != N:
        out = out[:N]
    return out.reshape(orig_shape)


def mlp_reference(x, params):
    """Pure-JAX f32 reference of the unfused forward pass (raw params)."""
    orig = x.shape
    xf = x.reshape(-1, orig[-1]).astype(jnp.float32)
    h = xf @ params["we"] + params["be"]
    a1 = h * params["alpha1"] + params["beta1"]
    tok = a1 * params["wt"][0] + params["bt"][0]
    r1 = a1 + params["g1"] * tok
    a2 = r1 * params["alpha2"] + params["beta2"]
    f1 = jax.nn.gelu(a2 @ params["w1"] + params["bf1"], approximate=False)
    f2 = f1 @ params["w2"] + params["bf2"]
    r2 = a2 + params["g2"] * f2
    a3 = r2 * params["alpha3"] + params["beta3"]
    out = a3 @ params["wh"] + params["bh"]
    return out.reshape(orig).astype(x.dtype)


def init_params(key, in_features, hidden_features):
    """Deterministic synthetic parameters (shapes match the PyTorch module)."""
    C, Hd = in_features, hidden_features
    ks = jax.random.split(key, 10)
    f32 = jnp.float32
    s = 0.1
    return {
        # Conv2d(C, C, 1) weight (C,C,1,1) -> stored transposed as (C_in, C_out)
        "we": s * jax.random.normal(ks[0], (C, C), f32),
        "be": s * jax.random.normal(ks[1], (1, C), f32),
        # Aff pre / post / final (alpha init ~1, beta init ~0 but perturbed)
        "alpha1": 1.0 + s * jax.random.normal(ks[2], (1, C), f32),
        "beta1": s * jax.random.normal(ks[3], (1, C), f32),
        "alpha2": 1.0 + s * jax.random.normal(ks[4], (1, C), f32),
        "beta2": s * jax.random.normal(ks[5], (1, C), f32),
        "alpha3": 1.0 + s * jax.random.normal(ks[6], (1, C), f32),
        "beta3": s * jax.random.normal(ks[7], (1, C), f32),
        # token-mix Linear(1, 1): scalar weight & bias
        "wt": jnp.array([0.7], f32),
        "bt": jnp.array([0.05], f32),
        # layer-scale gammas (PyTorch init 1e-4; g2 set non-trivially so the FF
        # branch materially contributes to the correctness check)
        "g1": jnp.full((1, C), 1e-4, f32),
        "g2": jnp.full((1, C), 0.2, f32),
        # FeedForward Linear(C->H), Linear(H->C), stored transposed
        "w1": s * jax.random.normal(ks[8], (C, Hd), f32),
        "bf1": s * jax.random.normal(ks[9], (1, Hd), f32),
        "w2": s * jax.random.normal(jax.random.fold_in(key, 101), (Hd, C), f32),
        "bf2": s * jax.random.normal(jax.random.fold_in(key, 102), (1, C), f32),
        # mlp_head Linear(C -> C), stored transposed
        "wh": s * jax.random.normal(jax.random.fold_in(key, 103), (C, C), f32),
        "bh": s * jax.random.normal(jax.random.fold_in(key, 104), (1, C), f32),
    }


if __name__ == "__main__":
    key = jax.random.PRNGKey(0)
    in_features = 32
    hidden_features = 64

    params = init_params(key, in_features, hidden_features)
    fused = fold_params(params)   # fold once, outside jit

    # (batch=2, seq=100, features=32) -> 200 rows: exercises row padding and a
    # multi-step grid (>= 4 steps -> both v7x TensorCores get work).
    x = jax.random.normal(jax.random.fold_in(key, 7), (2, 100, in_features),
                          jnp.float32)

    run = jax.jit(functools.partial(mlp_forward, tm=2048))
    y = jax.block_until_ready(run(x, fused))

    y_ref = mlp_reference(x, params)
    assert y.shape == x.shape
    # bf16 MXU operands + tanh GELU -> loosened tolerance vs exact f32 reference.
    err = float(jnp.max(jnp.abs(y - y_ref)))
    assert jnp.allclose(y, y_ref, rtol=2e-2, atol=2e-2), err

    print("KERNEL_OK")
</pallas_src>

<mosaic_0001>
module attributes {stable_mosaic.version = 11 : i64} {
  func.func @_mlp_kernel(%arg0: i32, %arg1: memref<16x128xf32, #tpu.memory_space<vmem>>, %arg2: memref<128x384xbf16, #tpu.memory_space<vmem>>, %arg3: memref<256x128xbf16, #tpu.memory_space<vmem>>, %arg4: memref<1x256xf32, #tpu.memory_space<vmem>>, %arg5: memref<1x128xf32, #tpu.memory_space<vmem>>, %arg6: memref<16x128xf32, #tpu.memory_space<vmem>>) attributes {dimension_semantics = [#tpu.dimension_semantics<parallel>], iteration_bounds = array<i64: 4>, scalar_prefetch = 0 : i64, scratch_operands = 0 : i64, tpu.core_type = #tpu.core_type<tc>, window_params = [{transform_indices = @transform_0, window_bounds = array<i64: 16, 128>}, {pipeline_mode = #tpu.pipeline_mode<synchronous>, transform_indices = @transform_1, window_bounds = array<i64: 128, 384>}, {pipeline_mode = #tpu.pipeline_mode<synchronous>, transform_indices = @transform_2, window_bounds = array<i64: 256, 128>}, {pipeline_mode = #tpu.pipeline_mode<synchronous>, transform_indices = @transform_3, window_bounds = array<i64: 1, 256>}, {pipeline_mode = #tpu.pipeline_mode<synchronous>, transform_indices = @transform_4, window_bounds = array<i64: 1, 128>}, {transform_indices = @transform_5, window_bounds = array<i64: 16, 128>}]} {
    %c0 = arith.constant 0 : index
    %c0_0 = arith.constant 0 : index
    %0 = vector.load %arg1[%c0, %c0_0] : memref<16x128xf32, #tpu.memory_space<vmem>>, vector<16x128xf32>
    %1 = arith.truncf %0 : vector<16x128xf32> to vector<16x128xbf16>
    %c0_1 = arith.constant 0 : index
    %c0_2 = arith.constant 0 : index
    %2 = vector.load %arg2[%c0_1, %c0_2] : memref<128x384xbf16, #tpu.memory_space<vmem>>, vector<128x384xbf16>
    %cst = arith.constant dense<0.000000e+00> : vector<16x384xf32>
    %3 = tpu.matmul %1, %2, %cst {dimension_numbers = #tpu.dot_dimension_numbers<[1], [0], [0], [1], [0, 0, 1, 1], [], []>} : vector<16x128xbf16>, vector<128x384xbf16>, vector<16x384xf32> -> vector<16x384xf32>
    %4 = vector.extract_strided_slice %3 {offsets = [0, 0], sizes = [16, 256], strides = [1, 1]} : vector<16x384xf32> to vector<16x256xf32>
    %c0_3 = arith.constant 0 : index
    %c0_4 = arith.constant 0 : index
    %5 = vector.load %arg4[%c0_3, %c0_4] : memref<1x256xf32, #tpu.memory_space<vmem>>, vector<1x256xf32>
    %6 = vector.broadcast %5 : vector<1x256xf32> to vector<16x256xf32>
    %7 = arith.addf %4, %6 : vector<16x256xf32>
    %8 = arith.mulf %7, %7 : vector<16x256xf32>
    %9 = arith.mulf %7, %8 : vector<16x256xf32>
    %cst_5 = arith.constant 4.471500e-02 : f32
    %10 = vector.broadcast %cst_5 : f32 to vector<16x256xf32>
    %11 = arith.mulf %10, %9 : vector<16x256xf32>
    %12 = arith.addf %7, %11 : vector<16x256xf32>
    %cst_6 = arith.constant 0.797884583 : f32
    %13 = vector.broadcast %cst_6 : f32 to vector<16x256xf32>
    %14 = arith.mulf %13, %12 : vector<16x256xf32>
    %15 = math.tanh %14 : vector<16x256xf32>
    %cst_7 = arith.constant 1.000000e+00 : f32
    %16 = vector.broadcast %cst_7 : f32 to vector<16x256xf32>
    %17 = arith.addf %16, %15 : vector<16x256xf32>
    %cst_8 = arith.constant 5.000000e-01 : f32
    %18 = vector.broadcast %cst_8 : f32 to vector<16x256xf32>
    %19 = arith.mulf %18, %17 : vector<16x256xf32>
    %20 = arith.mulf %7, %19 : vector<16x256xf32>
    %21 = arith.truncf %20 : vector<16x256xf32> to vector<16x256xbf16>
    %c0_9 = arith.constant 0 : index
    %c0_10 = arith.constant 0 : index
    %22 = vector.load %arg3[%c0_9, %c0_10] : memref<256x128xbf16, #tpu.memory_space<vmem>>, vector<256x128xbf16>
    %cst_11 = arith.constant dense<0.000000e+00> : vector<16x128xf32>
    %23 = tpu.matmul %21, %22, %cst_11 {dimension_numbers = #tpu.dot_dimension_numbers<[1], [0], [0], [1], [0, 0, 1, 1], [], []>} : vector<16x256xbf16>, vector<256x128xbf16>, vector<16x128xf32> -> vector<16x128xf32>
    %24 = vector.extract_strided_slice %3 {offsets = [0, 256], sizes = [16, 128], strides = [1, 1]} : vector<16x384xf32> to vector<16x128xf32>
    %25 = arith.addf %23, %24 : vector<16x128xf32>
    %c0_12 = arith.constant 0 : index
    %c0_13 = arith.constant 0 : index
    %26 = vector.load %arg5[%c0_12, %c0_13] : memref<1x128xf32, #tpu.memory_space<vmem>>, vector<1x128xf32>
    %27 = vector.broadcast %26 : vector<1x128xf32> to vector<16x128xf32>
    %28 = arith.addf %25, %27 : vector<16x128xf32>
    %c0_14 = arith.constant 0 : index
    %c0_15 = arith.constant 0 : index
    %29 = vector.load %arg6[%c0_14, %c0_15] : memref<16x128xf32, #tpu.memory_space<vmem>>, vector<16x128xf32>
    tpu.vector_store %arg6[%c0_14, %c0_15], %28 {strides = array<i32>} : memref<16x128xf32, #tpu.memory_space<vmem>>, vector<16x128xf32>,
    return
  }
  func.func @transform_0(%arg0: i32) -> (i32, i32) {
    %c0_i32 = arith.constant 0 : i32
    %c0_i32_0 = arith.constant 0 : i32
    return %arg0, %c0_i32 : i32, i32
  }
  func.func @transform_1(%arg0: i32) -> (i32, i32) {
    %c0_i32 = arith.constant 0 : i32
    %c0_i32_0 = arith.constant 0 : i32
    %c0_i32_1 = arith.constant 0 : i32
    return %c0_i32, %c0_i32_0 : i32, i32
  }
  func.func @transform_2(%arg0: i32) -> (i32, i32) {
    %c0_i32 = arith.constant 0 : i32
    %c0_i32_0 = arith.constant 0 : i32
    %c0_i32_1 = arith.constant 0 : i32
    return %c0_i32, %c0_i32_0 : i32, i32
  }
  func.func @transform_3(%arg0: i32) -> (i32, i32) {
    %c0_i32 = arith.constant 0 : i32
    %c0_i32_0 = arith.constant 0 : i32
    %c0_i32_1 = arith.constant 0 : i32
    return %c0_i32, %c0_i32_0 : i32, i32
  }
  func.func @transform_4(%arg0: i32) -> (i32, i32) {
    %c0_i32 = arith.constant 0 : i32
    %c0_i32_0 = arith.constant 0 : i32
    %c0_i32_1 = arith.constant 0 : i32
    return %c0_i32, %c0_i32_0 : i32, i32
  }
  func.func @transform_5(%arg0: i32) -> (i32, i32) {
    %c0_i32 = arith.constant 0 : i32
    %c0_i32_0 = arith.constant 0 : i32
    return %arg0, %c0_i32 : i32, i32
  }
}

</mosaic_0001>

<llo_original>
// kernel: mlp_forward.1
$region0: #{mlp_forward.1}
  #allocation0 [shape = 'u32[]', space=smem, size = 0x4, offset = 0x4, fixed_abs, tag = 'smem constant byte address 0x4 - core index']
  #allocation1 [shape = 'u32[144,128]{1,0:T(1,128)}', space=vmem, size = 0x12000, scoped, tag = 'internal scratch']
  %s0 = inlined_call_operand.vmem [shape: f32[64,128], index: 0, kind: input, shape index: {}]
  %s1 = inlined_call_operand.vmem [shape: bf16[128,384], index: 1, kind: input, shape index: {}]
  %s2 = inlined_call_operand.vmem [shape: bf16[256,128], index: 2, kind: input, shape index: {}]
  %s3 = inlined_call_operand.vmem [shape: f32[1,256], index: 3, kind: input, shape index: {}]
  %s4 = inlined_call_operand.vmem [shape: f32[1,128], index: 4, kind: input, shape index: {}]
  %s5 = inlined_call_operand.vmem [shape: f32[64,128], index: 5, kind: output, shape index: {}]
  %s6 = sld [smem:[#allocation0]]
  $region53: #{mlp_forward.1} parent=0
    _
  %s8 = ssub.s32 1, %s6
  %s9 = scalar_select 0, %s8, %s6
  loop: start=0, step=1, limit=6
  $region2: #{mlp_forward.1} parent=0 // loop_pre_header
    _
  $region3: #{mlp_forward.1} parent=0 // loop_header
    %s11 = sphi 0, %s15
    %p12 = scmp.ge.s32.totalorder %s11, 6
    %s21 = sphi 0, %s23
    %s24 = sphi 0, %s21
    %s25 = sphi 0, %s24
    %s41 = sphi 0, %s25
    %s45 = sphi 0, %s45
    %s47 = sphi 0, %s45
    %s48 = sphi 0, %s47
    %s62 = sphi 0, %s48
    %s66 = sphi 0, %s66
    %s68 = sphi 0, %s66
    %s69 = sphi 0, %s68
    %s83 = sphi 0, %s69
    %s87 = sphi 0, %s87
    %s89 = sphi 0, %s87
    %s90 = sphi 0, %s89
    %s104 = sphi 0, %s90
    %s108 = sphi 0, %s108
    %s110 = sphi 0, %s108
    %s111 = sphi 0, %s110
    %s125 = sphi 0, %s111
    %s131 = sphi 0, %s133
    %s134 = sphi 0, %s131
    %s135 = sphi 0, %s134
    %s151 = sphi 0, %s135
  $region4: #{mlp_forward.1} parent=0 // loop_header_branch
    %14 = sbr.rel (%p12) target = $region8
  $region5: #{mlp_forward.1} parent=0 // loop_body
    %s16 = ssub.s32 %s11, 1
    %s17 = ssub.s32 %s11, 2
    %s18 = sadd.s32 %s11, 1
    %s19 = ssub.s32 %s11, %s18
    %p20 = scmp.eq.s32.totalorder %s19, 0
    %s22 = sadd.s32 %s21, 1
    %s23 = scalar_select %p20, %s21, %s22
    %p26 = pneg %p20
    %p27 = scmp.eq.s32.totalorder %s11, 3
    %p28 = por %p26, %p27
    %p29 = scmp.ne.s32.totalorder %s21, %s24
    %p30 = scmp.eq.s32.totalorder %s11, 0
    %p31 = por %p29, %p30
    %p32 = scmp.ne.s32.totalorder %s21, %s24
    %p33 = scmp.eq.s32.totalorder %s16, 3
    %p34 = por %p32, %p33
    %p35 = scmp.ne.s32.totalorder %s24, %s25
    %p36 = scmp.eq.s32.totalorder %s16, 0
    %p37 = por %p35, %p36
    %p38 = scmp.ne.s32.totalorder %s24, %s25
    %p39 = scmp.eq.s32.totalorder %s17, 3
    %p40 = por %p38, %p39
    %p42 = scmp.ne.s32.totalorder %s25, %s41
    %p43 = scmp.eq.s32.totalorder %s17, 0
    %p44 = por %p42, %p43
    %s46 = sadd.s32 %s45, 1
    %p49 = scmp.eq.s32.totalorder %s11, 3
    %p50 = scmp.ne.s32.totalorder %s45, %s47
    %p51 = scmp.eq.s32.totalorder %s11, 0
    %p52 = por %p50, %p51
    %p53 = scmp.ne.s32.totalorder %s45, %s47
    %p54 = scmp.eq.s32.totalorder %s16, 3
    %p55 = por %p53, %p54
    %p56 = scmp.ne.s32.totalorder %s47, %s48
    %p57 = scmp.eq.s32.totalorder %s16, 0
    %p58 = por %p56, %p57
    %p59 = scmp.ne.s32.totalorder %s47, %s48
    %p60 = scmp.eq.s32.totalorder %s17, 3
    %p61 = por %p59, %p60
    %p63 = scmp.ne.s32.totalorder %s48, %s62
    %p64 = scmp.eq.s32.totalorder %s17, 0
    %p65 = por %p63, %p64
    %s67 = sadd.s32 %s66, 1
    %p70 = scmp.eq.s32.totalorder %s11, 3
    %p71 = scmp.ne.s32.totalorder %s66, %s68
    %p72 = scmp.eq.s32.totalorder %s11, 0
    %p73 = por %p71, %p72
    %p74 = scmp.ne.s32.totalorder %s66, %s68
    %p75 = scmp.eq.s32.totalorder %s16, 3
    %p76 = por %p74, %p75
    %p77 = scmp.ne.s32.totalorder %s68, %s69
    %p78 = scmp.eq.s32.totalorder %s16, 0
    %p79 = por %p77, %p78
    %p80 = scmp.ne.s32.totalorder %s68, %s69
    %p81 = scmp.eq.s32.totalorder %s17, 3
    %p82 = por %p80, %p81
    %p84 = scmp.ne.s32.totalorder %s69, %s83
    %p85 = scmp.eq.s32.totalorder %s17, 0
    %p86 = por %p84, %p85
    %s88 = sadd.s32 %s87, 1
    %p91 = scmp.eq.s32.totalorder %s11, 3
    %p92 = scmp.ne.s32.totalorder %s87, %s89
    %p93 = scmp.eq.s32.totalorder %s11, 0
    %p94 = por %p92, %p93
    %p95 = scmp.ne.s32.totalorder %s87, %s89
    %p96 = scmp.eq.s32.totalorder %s16, 3
    %p97 = por %p95, %p96
    %p98 = scmp.ne.s32.totalorder %s89, %s90
    %p99 = scmp.eq.s32.totalorder %s16, 0
    %p100 = por %p98, %p99
    %p101 = scmp.ne.s32.totalorder %s89, %s90
    %p102 = scmp.eq.s32.totalorder %s17, 3
    %p103 = por %p101, %p102
    %p105 = scmp.ne.s32.totalorder %s90, %s104
    %p106 = scmp.eq.s32.totalorder %s17, 0
    %p107 = por %p105, %p106
    %s109 = sadd.s32 %s108, 1
    %p112 = scmp.eq.s32.totalorder %s11, 3
    %p113 = scmp.ne.s32.totalorder %s108, %s110
    %p114 = scmp.eq.s32.totalorder %s11, 0
    %p115 = por %p113, %p114
    %p116 = scmp.ne.s32.totalorder %s108, %s110
    %p117 = scmp.eq.s32.totalorder %s16, 3
    %p118 = por %p116, %p117
    %p119 = scmp.ne.s32.totalorder %s110, %s111
    %p120 = scmp.eq.s32.totalorder %s16, 0
    %p121 = por %p119, %p120
    %p122 = scmp.ne.s32.totalorder %s110, %s111
    %p123 = scmp.eq.s32.totalorder %s17, 3
    %p124 = por %p122, %p123
    %p126 = scmp.ne.s32.totalorder %s111, %s125
    %p127 = scmp.eq.s32.totalorder %s17, 0
    %p128 = por %p126, %p127
    %s129 = ssub.s32 %s11, %s18
    %p130 = scmp.eq.s32.totalorder %s129, 0
    %s132 = sadd.s32 %s131, 1
    %s133 = scalar_select %p130, %s131, %s132
    %p136 = pneg %p130
    %p137 = scmp.eq.s32.totalorder %s11, 3
    %p138 = por %p136, %p137
    %p139 = scmp.ne.s32.totalorder %s131, %s134
    %p140 = scmp.eq.s32.totalorder %s11, 0
    %p141 = por %p139, %p140
    %p142 = scmp.ne.s32.totalorder %s131, %s134
    %p143 = scmp.eq.s32.totalorder %s16, 3
    %p144 = por %p142, %p143
    %p145 = scmp.ne.s32.totalorder %s134, %s135
    %p146 = scmp.eq.s32.totalorder %s16, 0
    %p147 = por %p145, %p146
    %p148 = scmp.ne.s32.totalorder %s134, %s135
    %p149 = scmp.eq.s32.totalorder %s17, 3
    %p150 = por %p148, %p149
    %p152 = scmp.ne.s32.totalorder %s135, %s151
    %p153 = scmp.eq.s32.totalorder %s17, 0
    %p154 = por %p152, %p153
    %p155 = scmp.le.s32.totalorder 1, %s11
    %p156 = scmp.lt.s32.totalorder %s11, 5
    %p157 = pnand %p155, %p156
    %p158 = pneg %p157
    // Predicated region
    $region9: #{mlp_forward.1} parent=5 // pred_check
      _
    $region10: #{mlp_forward.1} parent=5 // pred_check_branch
      %160 = sbr.rel (%p157) target = $region12
    $region11: #{mlp_forward.1} parent=5 // pred_region
      %s161 = ssub.s32 %s11, 1
      // Predicated region
      $region13: #{mlp_forward.1} parent=11 // pred_check
        %p162 = pneg %p58
      $region14: #{mlp_forward.1} parent=11 // pred_check_branch
        %164 = sbr.rel (%p162) target = $region16
      $region15: #{mlp_forward.1} parent=11 // pred_region
        _
      $region16: #{mlp_forward.1} parent=11 // pred_fallthru
        _
      // Predicated region
      $region17: #{mlp_forward.1} parent=11 // pred_check
        %p165 = pneg %p79
      $region18: #{mlp_forward.1} parent=11 // pred_check_branch
        %167 = sbr.rel (%p165) target = $region20
      $region19: #{mlp_forward.1} parent=11 // pred_region
        _
      $region20: #{mlp_forward.1} parent=11 // pred_fallthru
        _
      // Predicated region
      $region21: #{mlp_forward.1} parent=11 // pred_check
        %p168 = pneg %p100
      $region22: #{mlp_forward.1} parent=11 // pred_check_branch
        %170 = sbr.rel (%p168) target = $region24
      $region23: #{mlp_forward.1} parent=11 // pred_region
        _
      $region24: #{mlp_forward.1} parent=11 // pred_fallthru
        _
      // Predicated region
      $region25: #{mlp_forward.1} parent=11 // pred_check
        %p171 = pneg %p121
      $region26: #{mlp_forward.1} parent=11 // pred_check_branch
        %173 = sbr.rel (%p171) target = $region28
      $region27: #{mlp_forward.1} parent=11 // pred_region
        _
      $region28: #{mlp_forward.1} parent=11 // pred_fallthru
        _
    $region12: #{mlp_forward.1} parent=5 // pred_fallthru
      _
    %p174 = scmp.lt.s32.totalorder %s11, 4
    // Predicated region
    $region29: #{mlp_forward.1} parent=5 // pred_check
      %p175 = pneg %p174
    $region30: #{mlp_forward.1} parent=5 // pred_check_branch
      %177 = sbr.rel (%p175) target = $region32
    $region31: #{mlp_forward.1} parent=5 // pred_region
      // Predicated region
      $region33: #{mlp_forward.1} parent=31 // pred_check
        %p178 = pneg %p31
      $region34: #{mlp_forward.1} parent=31 // pred_check_branch
        %180 = sbr.rel (%p178) target = $region36
      $region35: #{mlp_forward.1} parent=31 // pred_region
        %s181 = smul.u32 2, %s11
        %p182 = scmp.lt.s32.totalorder %s181, 7
        %s183 = scalar_select %p182, %s181, 7
        %s184 = smul.addr %s183, 8
        %s185 = scalar_lea.vmem %s0, %s184
        %s186 = smul.u32 2, %s11
      $region36: #{mlp_forward.1} parent=31 // pred_fallthru
        _
    $region32: #{mlp_forward.1} parent=5 // pred_fallthru
      _
    %p187 = scmp.le.s32.totalorder 1, %s11
    %p188 = scmp.lt.s32.totalorder %s11, 5
    %p189 = pnand %p187, %p188
    %p190 = pneg %p189
    // Predicated region
    $region37: #{mlp_forward.1} parent=5 // pred_check
      _
    $region38: #{mlp_forward.1} parent=5 // pred_check_branch
      %192 = sbr.rel (%p189) target = $region40
    $region39: #{mlp_forward.1} parent=5 // pred_region
      %s193 = ssub.s32 %s11, 1
      %s194 = smul.u32 2, %s16
      %p195 = scmp.lt.s32.totalorder %s194, 7
      %s196 = scalar_select %p195, %s194, 7
      %s197 = smul.addr %s196, 8
      %s198 = scalar_lea.vmem %s0, %s197
      %p199 = pneg %p37
      %p200 = pneg %p34
      %p201 = pneg %p58
      %p202 = pneg %p55
      %p203 = pneg %p79
      %p204 = pneg %p76
      %p205 = pneg %p100
      %p206 = pneg %p97
      %p207 = pneg %p121
      %p208 = pneg %p118
      %p209 = pneg %p147
      %p210 = pneg %p144
      %s211 = smul.u32 2, %s16
      %p212 = scmp.lt.s32.totalorder %s211, 7
      %s213 = scalar_select %p212, %s211, 7
      %s214 = smul.addr %s213, 8
      %s215 = scalar_lea.vmem %s5, %s214
      %s216 = smul.u32 2, %s16
      %p217 = scmp.lt.s32.totalorder %s216, 7
      %s218 = scalar_select %p217, %s216, 7
      %s219 = smul.addr %s218, 8
      %s220 = scalar_lea.vmem %s0, %s219
      %s221 = smul.u32 2, %s16
      %s222 = smul.u32 2, %s16
      %p223 = scmp.lt.s32.totalorder %s222, 7
      %s224 = scalar_select %p223, %s222, 7
      %s225 = smul.addr %s224, 8
      %s226 = scalar_lea.vmem %s5, %s225
      %s227 = smul.u32 2, %s16
      %v229 = vld [vmem:[%s220] sm:$0xff]
      %v230 = vld [vmem:[%s220 + $0x8] sm:$0xff]
      %v231 = vpack.c.bf16 %v230, %v229
      %v232 = vld [vmem:[%s1] sm:$0xff]
      %v233 = vld [vmem:[%s1 + $0x8] sm:$0xf]
      %v234 = vld [vmem:[%s1 + $0xc] sm:$0xff]
      %v235 = vld [vmem:[%s1 + $0x14] sm:$0xf]
      %v236 = vld [vmem:[%s1 + $0x18] sm:$0xff]
      %v237 = vld [vmem:[%s1 + $0x20] sm:$0xf]
      %v238 = vld [vmem:[%s1 + $0x24] sm:$0xff]
      %v239 = vld [vmem:[%s1 + $0x2c] sm:$0xf]
      %v240 = vld [vmem:[%s1 + $0x30] sm:$0xff]
      %v241 = vld [vmem:[%s1 + $0x38] sm:$0xf]
      %v242 = vld [vmem:[%s1 + $0x3c] sm:$0xff]
      %v243 = vld [vmem:[%s1 + $0x44] sm:$0xf]
      %v244 = vld [vmem:[%s1 + $0x48] sm:$0xff]
      %v245 = vld [vmem:[%s1 + $0x50] sm:$0xf]
      %v246 = vld [vmem:[%s1 + $0x54] sm:$0xff]
      %v247 = vld [vmem:[%s1 + $0x5c] sm:$0xf]
      %v248 = vld [vmem:[%s1 + $0x60] sm:$0xff]
      %v249 = vld [vmem:[%s1 + $0x68] sm:$0xf]
      %v250 = vld [vmem:[%s1 + $0x6c] sm:$0xff]
      %v251 = vld [vmem:[%s1 + $0x74] sm:$0xf]
      %v252 = vld [vmem:[%s1 + $0x78] sm:$0xff]
      %v253 = vld [vmem:[%s1 + $0x80] sm:$0xf]
      %v254 = vld [vmem:[%s1 + $0x84] sm:$0xff]
      %v255 = vld [vmem:[%s1 + $0x8c] sm:$0xf]
      %v256 = vld [vmem:[%s1 + $0x90] sm:$0xff]
      %v257 = vld [vmem:[%s1 + $0x98] sm:$0xf]
      %v258 = vld [vmem:[%s1 + $0x9c] sm:$0xff]
      %v259 = vld [vmem:[%s1 + $0xa4] sm:$0xf]
      %v260 = vld [vmem:[%s1 + $0xa8] sm:$0xff]
      %v261 = vld [vmem:[%s1 + $0xb0] sm:$0xf]
      %v262 = vld [vmem:[%s1 + $0xb4] sm:$0xff]
      %v263 = vld [vmem:[%s1 + $0xbc] sm:$0xf]
      %v296 = vunpack.c.l.b16 %v232
      %v297 = vunpack.c.h.b16 %v232
      %v298 = vunpack.c.l.b16 %v233
      %v299 = vunpack.c.l.b16 %v234
      %v300 = vunpack.c.h.b16 %v234
      %v301 = vunpack.c.l.b16 %v235
      %v302 = vunpack.c.l.b16 %v236
      %v303 = vunpack.c.h.b16 %v236
      %v304 = vunpack.c.l.b16 %v237
      %v305 = vunpack.c.l.b16 %v238
      %v306 = vunpack.c.h.b16 %v238
      %v307 = vunpack.c.l.b16 %v239
      %v308 = vunpack.c.l.b16 %v240
      %v309 = vunpack.c.h.b16 %v240
      %v310 = vunpack.c.l.b16 %v241
      %v311 = vunpack.c.l.b16 %v242
      %v312 = vunpack.c.h.b16 %v242
      %v313 = vunpack.c.l.b16 %v243
      %v314 = vunpack.c.l.b16 %v244
      %v315 = vunpack.c.h.b16 %v244
      %v316 = vunpack.c.l.b16 %v245
      %v317 = vunpack.c.l.b16 %v246
      %v318 = vunpack.c.h.b16 %v246
      %v319 = vunpack.c.l.b16 %v247
      %v320 = vunpack.c.l.b16 %v248
      %v321 = vunpack.c.h.b16 %v248
      %v322 = vunpack.c.l.b16 %v249
      %v323 = vunpack.c.l.b16 %v250
      %v324 = vunpack.c.h.b16 %v250
      %v325 = vunpack.c.l.b16 %v251
      %v326 = vunpack.c.l.b16 %v252
      %v327 = vunpack.c.h.b16 %v252
      %v328 = vunpack.c.l.b16 %v253
      %v329 = vunpack.c.l.b16 %v254
      %v330 = vunpack.c.h.b16 %v254
      %v331 = vunpack.c.l.b16 %v255
      %v332 = vunpack.c.l.b16 %v256
      %v333 = vunpack.c.h.b16 %v256
      %v334 = vunpack.c.l.b16 %v257
      %v335 = vunpack.c.l.b16 %v258
      %v336 = vunpack.c.h.b16 %v258
      %v337 = vunpack.c.l.b16 %v259
      %v338 = vunpack.c.l.b16 %v260
      %v339 = vunpack.c.h.b16 %v260
      %v340 = vunpack.c.l.b16 %v261
      %v341 = vunpack.c.l.b16 %v262
      %v342 = vunpack.c.h.b16 %v262
      %v343 = vunpack.c.l.b16 %v263
      %v344 = vpack.c.b16 %v299, %v296
      %v345 = vpack.c.b16 %v300, %v297
      %v346 = vpack.c.b16 %v301, %v298
      %v347 = vpack.c.b16 %v305, %v302
      %v348 = vpack.c.b16 %v306, %v303
      %v349 = vpack.c.b16 %v307, %v304
      %v350 = vpack.c.b16 %v311, %v308
      %v351 = vpack.c.b16 %v312, %v309
      %v352 = vpack.c.b16 %v313, %v310
      %v353 = vpack.c.b16 %v317, %v314
      %v354 = vpack.c.b16 %v318, %v315
      %v355 = vpack.c.b16 %v319, %v316
      %v356 = vpack.c.b16 %v323, %v320
      %v357 = vpack.c.b16 %v324, %v321
      %v358 = vpack.c.b16 %v325, %v322
      %v359 = vpack.c.b16 %v329, %v326
      %v360 = vpack.c.b16 %v330, %v327
      %v361 = vpack.c.b16 %v331, %v328
      %v362 = vpack.c.b16 %v335, %v332
      %v363 = vpack.c.b16 %v336, %v333
      %v364 = vpack.c.b16 %v337, %v334
      %v365 = vpack.c.b16 %v341, %v338
      %v366 = vpack.c.b16 %v342, %v339
      %v367 = vpack.c.b16 %v343, %v340
      %392 = vmatprep.subr.bf16.mxu0 %v345
      %393 = vmatpush1.bf16.msra.mxu0 %v344
      %394 = vmatprep.subr.bf16.mxu0 %v348
      %395 = vmatpush1.bf16.msra.mxu0 %v347
      %396 = vmatprep.subr.bf16.mxu0 %v351
      %397 = vmatpush1.bf16.msra.mxu0 %v350
      %398 = vmatprep.subr.bf16.mxu0 %v354
      %399 = vmatpush1.bf16.msra.mxu0 %v353
      %400 = vmatprep.subr.bf16.mxu0 %v357
      %401 = vmatpush1.bf16.msra.mxu0 %v356
      %402 = vmatprep.subr.bf16.mxu0 %v360
      %403 = vmatpush1.bf16.msra.mxu0 %v359
      %404 = vmatprep.subr.bf16.mxu0 %v363
      %405 = vmatpush1.bf16.msra.mxu0 %v362
      %406 = vmatprep.subr.bf16.mxu0 %v366
      %407 = vmatpush1.bf16.msra.mxu0 %v365
      %408 = vmatprep.subr.bf16.mxu0 0
      %409 = vmatpush1.bf16.msra.mxu0 0
      %410 = vmatprep.subr.bf16.mxu0 0
      %411 = vmatpush1.bf16.msra.mxu0 0
      %412 = vmatprep.subr.bf16.mxu0 0
      %413 = vmatpush1.bf16.msra.mxu0 0
      %414 = vmatprep.subr.bf16.mxu0 0
      %415 = vmatpush1.bf16.msra.mxu0 0
      %416 = vmatprep.subr.bf16.mxu0 0
      %417 = vmatpush1.bf16.msra.mxu0 0
      %418 = vmatprep.subr.bf16.mxu0 0
      %419 = vmatpush1.bf16.msra.mxu0 0
      %420 = vmatprep.subr.bf16.mxu0 0
      %421 = vmatpush1.bf16.msra.mxu0 0
      %422 = vmatprep.subr.bf16.mxu0 0
      %423 = vmatpush1.bf16.msra.mxu0 0
      %424 = vmatprep.mubr.bf16.mxu0 0
      %425 = vmatmul.mubr.bf16.gmra.mrb[0].mxu0 %v231
      %v426 = vpop.f32.mrb[0].mxu0
      %v427 = vadd.f32 0.0, %v426
      %v428 = vpop.f32.mrb[0].mxu0
      %v429 = vadd.f32 0.0, %v428
      %v430 = vpop.f32.mrb[0].mxu0
      %v431 = vadd.f32 0.0, %v430
      %v432 = vpop.f32.mrb[0].mxu0
      %v433 = vadd.f32 0.0, %v432
      %434 = vdwg.mxu0
      %435 = vmatprep.subr.bf16.mxu0 0
      %436 = vmatpush1.bf16.msra.mxu0 %v346
      %437 = vmatprep.subr.bf16.mxu0 0
      %438 = vmatpush1.bf16.msra.mxu0 %v349
      %439 = vmatprep.subr.bf16.mxu0 0
      %440 = vmatpush1.bf16.msra.mxu0 %v352
      %441 = vmatprep.subr.bf16.mxu0 0
      %442 = vmatpush1.bf16.msra.mxu0 %v355
      %443 = vmatprep.subr.bf16.mxu0 0
      %444 = vmatpush1.bf16.msra.mxu0 %v358
      %445 = vmatprep.subr.bf16.mxu0 0
      %446 = vmatpush1.bf16.msra.mxu0 %v361
      %447 = vmatprep.subr.bf16.mxu0 0
      %448 = vmatpush1.bf16.msra.mxu0 %v364
      %449 = vmatprep.subr.bf16.mxu0 0
      %450 = vmatpush1.bf16.msra.mxu0 %v367
      %451 = vmatprep.subr.bf16.mxu0 0
      %452 = vmatpush1.bf16.msra.mxu0 0
      %453 = vmatprep.subr.bf16.mxu0 0
      %454 = vmatpush1.bf16.msra.mxu0 0
      %455 = vmatprep.subr.bf16.mxu0 0
      %456 = vmatpush1.bf16.msra.mxu0 0
      %457 = vmatprep.subr.bf16.mxu0 0
      %458 = vmatpush1.bf16.msra.mxu0 0
      %459 = vmatprep.subr.bf16.mxu0 0
      %460 = vmatpush1.bf16.msra.mxu0 0
      %461 = vmatprep.subr.bf16.mxu0 0
      %462 = vmatpush1.bf16.msra.mxu0 0
      %463 = vmatprep.subr.bf16.mxu0 0
      %464 = vmatpush1.bf16.msra.mxu0 0
      %465 = vmatprep.subr.bf16.mxu0 0
      %466 = vmatpush1.bf16.msra.mxu0 0
      %467 = vmatprep.mubr.bf16.mxu0 0
      %468 = vmatmul.mubr.bf16.gmra.mrb[0].mxu0 %v231
      %v469 = vpop.f32.mrb[0].mxu0
      %v470 = vadd.f32 0.0, %v469
      %v471 = vpop.f32.mrb[0].mxu0
      %v472 = vpop.f32.mrb[0].mxu0
      %v473 = vadd.f32 0.0, %v472
      %v474 = vpop.f32.mrb[0].mxu0
      %475 = vdwg.mxu0
      %v476 = vld [vmem:[%s3] sm:$0x3]
      %v478 = vlaneseq
      %v479 = vshrl.u32 %v478, 7
      %v480 = vsub.s32 0, %v479
      %v481 = vrot.slane %v476, %v480
      %v482 = vlaneseq
      %v483 = vshrl.u32 %v482, 7
      %v484 = vsub.s32 1, %v483
      %v485 = vrot.slane %v476, %v484
      %v488 = vadd.f32 %v427, %v481
      %v489 = vadd.f32 %v429, %v485
      %v490 = vadd.f32 %v431, %v481
      %v491 = vadd.f32 %v433, %v485
      %v492 = vmul.f32 %v488, %v488
      %v493 = vmul.f32 %v489, %v489
      %v494 = vmul.f32 %v490, %v490
      %v495 = vmul.f32 %v491, %v491
      %v496 = vmul.f32 %v488, %v492
      %v497 = vmul.f32 %v489, %v493
      %v498 = vmul.f32 %v490, %v494
      %v499 = vmul.f32 %v491, %v495
      %v500 = vmul.f32 %v496, 0.044715
      %v501 = vmul.f32 %v497, 0.044715
      %v502 = vmul.f32 %v498, 0.044715
      %v503 = vmul.f32 %v499, 0.044715
      %v504 = vadd.f32 %v488, %v500
      %v505 = vadd.f32 %v489, %v501
      %v506 = vadd.f32 %v490, %v502
      %v507 = vadd.f32 %v491, %v503
      %v508 = vmul.f32 %v504, 0.7978846
      %v509 = vmul.f32 %v505, 0.7978846
      %v510 = vmul.f32 %v506, 0.7978846
      %v511 = vmul.f32 %v507, 0.7978846
      %v512 = vtanh.pop %v508
      %v513 = vtanh.pop %v509
      %v514 = vtanh.pop %v510
      %v515 = vtanh.pop %v511
      %v516 = vadd.f32 %v512, 1.0
      %v517 = vadd.f32 %v513, 1.0
      %v518 = vadd.f32 %v514, 1.0
      %v519 = vadd.f32 %v515, 1.0
      %v520 = vmul.f32 %v516, 0.5
      %v521 = vmul.f32 %v517, 0.5
      %v522 = vmul.f32 %v518, 0.5
      %v523 = vmul.f32 %v519, 0.5
      %v524 = vmul.f32 %v488, %v520
      %v525 = vmul.f32 %v489, %v521
      %v526 = vmul.f32 %v490, %v522
      %v527 = vmul.f32 %v491, %v523
      %v528 = vpack.c.bf16 %v526, %v524
      %v529 = vpack.c.bf16 %v527, %v525
      %v530 = vld [vmem:[%s2] sm:$0xf]
      %v531 = vld [vmem:[%s2 + $0x4] sm:$0xf]
      %v532 = vld [vmem:[%s2 + $0x8] sm:$0xf]
      %v533 = vld [vmem:[%s2 + $0xc] sm:$0xf]
      %v534 = vld [vmem:[%s2 + $0x10] sm:$0xf]
      %v535 = vld [vmem:[%s2 + $0x14] sm:$0xf]
      %v536 = vld [vmem:[%s2 + $0x18] sm:$0xf]
      %v537 = vld [vmem:[%s2 + $0x1c] sm:$0xf]
      %v538 = vld [vmem:[%s2 + $0x20] sm:$0xf]
      %v539 = vld [vmem:[%s2 + $0x24] sm:$0xf]
      %v540 = vld [vmem:[%s2 + $0x28] sm:$0xf]
      %v541 = vld [vmem:[%s2 + $0x2c] sm:$0xf]
      %v542 = vld [vmem:[%s2 + $0x30] sm:$0xf]
      %v543 = vld [vmem:[%s2 + $0x34] sm:$0xf]
      %v544 = vld [vmem:[%s2 + $0x38] sm:$0xf]
      %v545 = vld [vmem:[%s2 + $0x3c] sm:$0xf]
      %v546 = vld [vmem:[%s2 + $0x40] sm:$0xf]
      %v547 = vld [vmem:[%s2 + $0x44] sm:$0xf]
      %v548 = vld [vmem:[%s2 + $0x48] sm:$0xf]
      %v549 = vld [vmem:[%s2 + $0x4c] sm:$0xf]
      %v550 = vld [vmem:[%s2 + $0x50] sm:$0xf]
      %v551 = vld [vmem:[%s2 + $0x54] sm:$0xf]
      %v552 = vld [vmem:[%s2 + $0x58] sm:$0xf]
      %v553 = vld [vmem:[%s2 + $0x5c] sm:$0xf]
      %v554 = vld [vmem:[%s2 + $0x60] sm:$0xf]
      %v555 = vld [vmem:[%s2 + $0x64] sm:$0xf]
      %v556 = vld [vmem:[%s2 + $0x68] sm:$0xf]
      %v557 = vld [vmem:[%s2 + $0x6c] sm:$0xf]
      %v558 = vld [vmem:[%s2 + $0x70] sm:$0xf]
      %v559 = vld [vmem:[%s2 + $0x74] sm:$0xf]
      %v560 = vld [vmem:[%s2 + $0x78] sm:$0xf]
      %v561 = vld [vmem:[%s2 + $0x7c] sm:$0xf]
      %v594 = vunpack.c.l.b16 %v530
      %v595 = vunpack.c.l.b16 %v531
      %v596 = vunpack.c.l.b16 %v532
      %v597 = vunpack.c.l.b16 %v533
      %v598 = vunpack.c.l.b16 %v534
      %v599 = vunpack.c.l.b16 %v535
      %v600 = vunpack.c.l.b16 %v536
      %v601 = vunpack.c.l.b16 %v537
      %v602 = vunpack.c.l.b16 %v538
      %v603 = vunpack.c.l.b16 %v539
      %v604 = vunpack.c.l.b16 %v540
      %v605 = vunpack.c.l.b16 %v541
      %v606 = vunpack.c.l.b16 %v542
      %v607 = vunpack.c.l.b16 %v543
      %v608 = vunpack.c.l.b16 %v544
      %v609 = vunpack.c.l.b16 %v545
      %v610 = vunpack.c.l.b16 %v546
      %v611 = vunpack.c.l.b16 %v547
      %v612 = vunpack.c.l.b16 %v548
      %v613 = vunpack.c.l.b16 %v549
      %v614 = vunpack.c.l.b16 %v550
      %v615 = vunpack.c.l.b16 %v551
      %v616 = vunpack.c.l.b16 %v552
      %v617 = vunpack.c.l.b16 %v553
      %v618 = vunpack.c.l.b16 %v554
      %v619 = vunpack.c.l.b16 %v555
      %v620 = vunpack.c.l.b16 %v556
      %v621 = vunpack.c.l.b16 %v557
      %v622 = vunpack.c.l.b16 %v558
      %v623 = vunpack.c.l.b16 %v559
      %v624 = vunpack.c.l.b16 %v560
      %v625 = vunpack.c.l.b16 %v561
      %v626 = vpack.c.b16 %v595, %v594
      %v627 = vpack.c.b16 %v597, %v596
      %v628 = vpack.c.b16 %v599, %v598
      %v629 = vpack.c.b16 %v601, %v600
      %v630 = vpack.c.b16 %v603, %v602
      %v631 = vpack.c.b16 %v605, %v604
      %v632 = vpack.c.b16 %v607, %v606
      %v633 = vpack.c.b16 %v609, %v608
      %v634 = vpack.c.b16 %v611, %v610
      %v635 = vpack.c.b16 %v613, %v612
      %v636 = vpack.c.b16 %v615, %v614
      %v637 = vpack.c.b16 %v617, %v616
      %v638 = vpack.c.b16 %v619, %v618
      %v639 = vpack.c.b16 %v621, %v620
      %v640 = vpack.c.b16 %v623, %v622
      %v641 = vpack.c.b16 %v625, %v624
      %658 = vmatprep.subr.bf16.mxu0 0
      %659 = vmatpush1.bf16.msra.mxu0 %v626
      %660 = vmatprep.subr.bf16.mxu0 0
      %661 = vmatpush1.bf16.msra.mxu0 %v627
      %662 = vmatprep.subr.bf16.mxu0 0
      %663 = vmatpush1.bf16.msra.mxu0 %v628
      %664 = vmatprep.subr.bf16.mxu0 0
      %665 = vmatpush1.bf16.msra.mxu0 %v629
      %666 = vmatprep.subr.bf16.mxu0 0
      %667 = vmatpush1.bf16.msra.mxu0 %v630
      %668 = vmatprep.subr.bf16.mxu0 0
      %669 = vmatpush1.bf16.msra.mxu0 %v631
      %670 = vmatprep.subr.bf16.mxu0 0
      %671 = vmatpush1.bf16.msra.mxu0 %v632
      %672 = vmatprep.subr.bf16.mxu0 0
      %673 = vmatpush1.bf16.msra.mxu0 %v633
      %674 = vmatprep.subr.bf16.mxu0 0
      %675 = vmatpush1.bf16.msra.mxu0 %v634
      %676 = vmatprep.subr.bf16.mxu0 0
      %677 = vmatpush1.bf16.msra.mxu0 %v635
      %678 = vmatprep.subr.bf16.mxu0 0
      %679 = vmatpush1.bf16.msra.mxu0 %v636
      %680 = vmatprep.subr.bf16.mxu0 0
      %681 = vmatpush1.bf16.msra.mxu0 %v637
      %682 = vmatprep.subr.bf16.mxu0 0
      %683 = vmatpush1.bf16.msra.mxu0 %v638
      %684 = vmatprep.subr.bf16.mxu0 0
      %685 = vmatpush1.bf16.msra.mxu0 %v639
      %686 = vmatprep.subr.bf16.mxu0 0
      %687 = vmatpush1.bf16.msra.mxu0 %v640
      %688 = vmatprep.subr.bf16.mxu0 0
      %689 = vmatpush1.bf16.msra.mxu0 %v641
      %690 = vmatprep.mubr.bf16.mxu0 %v529
      %691 = vmatmul.mubr.bf16.gmra.mrb[0].mxu0 %v528
      %v692 = vpop.f32.mrb[0].mxu0
      %v693 = vadd.f32 %v470, %v692
      %v694 = vpop.f32.mrb[0].mxu0
      %v695 = vpop.f32.mrb[0].mxu0
      %v696 = vadd.f32 %v473, %v695
      %v697 = vpop.f32.mrb[0].mxu0
      %698 = vdwg.mxu0
      %v699 = vld [vmem:[%s4] sm:$0x1]
      %v701 = vlaneseq
      %v702 = vshrl.u32 %v701, 7
      %v703 = vsub.s32 0, %v702
      %v704 = vrot.slane %v699, %v703
      %v706 = vadd.f32 %v693, %v704
      %v707 = vadd.f32 %v696, %v704
      %708 = vst [vmem:[%s226] sm:$0xff] %v706
      %709 = vst [vmem:[%s226 + $0x8] sm:$0xff] %v707
      %s710 = smul.u32 2, %s16
      %p711 = scmp.lt.s32.totalorder %s710, 7
      %s712 = scalar_select %p711, %s710, 7
      %s713 = smul.addr %s712, 8
      %s714 = scalar_lea.vmem %s5, %s713
      // Predicated region
      $region41: #{mlp_forward.1} parent=39 // pred_check
        %p715 = pneg %p144
      $region42: #{mlp_forward.1} parent=39 // pred_check_branch
        %717 = sbr.rel (%p715) target = $region44
      $region43: #{mlp_forward.1} parent=39 // pred_region
        %s718 = smul.u32 2, %s16
      $region44: #{mlp_forward.1} parent=39 // pred_fallthru
        _
    $region40: #{mlp_forward.1} parent=5 // pred_fallthru
      _
    %p719 = scmp.le.s32.totalorder 2, %s11
    // Predicated region
    $region45: #{mlp_forward.1} parent=5 // pred_check
      %p720 = pneg %p719
    $region46: #{mlp_forward.1} parent=5 // pred_check_branch
      %722 = sbr.rel (%p720) target = $region48
    $region47: #{mlp_forward.1} parent=5 // pred_region
      %s723 = ssub.s32 %s11, 2
      // Predicated region
      $region49: #{mlp_forward.1} parent=47 // pred_check
        %p724 = pneg %p150
      $region50: #{mlp_forward.1} parent=47 // pred_check_branch
        %726 = sbr.rel (%p724) target = $region52
      $region51: #{mlp_forward.1} parent=47 // pred_region
        %s727 = smul.u32 2, %s17
        %p728 = scmp.lt.s32.totalorder %s727, 7
        %s729 = scalar_select %p728, %s727, 7
        %s730 = smul.addr %s729, 8
        %s731 = scalar_lea.vmem %s5, %s730
      $region52: #{mlp_forward.1} parent=47 // pred_fallthru
        _
    $region48: #{mlp_forward.1} parent=5 // pred_fallthru
      _
  $region6: #{mlp_forward.1} parent=0 // loop_footer
    %s15 = sadd.s32 1, %s11
  $region7: #{mlp_forward.1} parent=0 // loop_footer_branch
    %10 = sbr.rel target = $region3
  $region8: #{mlp_forward.1} parent=0 // loop_exit
    _

</llo_original>
